<compile_context>
chip_gen: v6e
topology: v6e:2x2x1
jax: 0.10.0
libtpu: 0.0.40
codegen_flags: <defaults>
</compile_context>

<pallas_src>
import functools

import jax
import jax.numpy as jnp
from jax.experimental import pallas as pl
from jax.experimental.pallas import tpu as pltpu


# ----------------------------------------------------------------------------
# Fused Pallas kernel
# ----------------------------------------------------------------------------

def _round_up(x, m):
    return ((x + m - 1) // m) * m


def _fused_encoder_kernel(idx_ref, x_ref, w_ref, b_ref, tab_ref, o_ref,
                          *, layout, v_pad, out_pad):
    """Fused forward for all feature encoders.

    idx_ref : SMEM (N_EMB, B)        int32  embedding indices (row e = feature e)
    x_ref   : VMEM (B, LIN_PAD)      f32    column j = scalar input of linear j
    w_ref   : VMEM (LIN_PAD, D_LIN)  f32    row j = weight vector of linear j (in_features == 1)
    b_ref   : VMEM (LIN_PAD, D_LIN)  f32    row j = bias of linear j
    tab_ref : VMEM (N_EMB*v_pad, D_EMB) f32 stacked, zero-padded embedding tables
    o_ref   : VMEM (B, out_pad)      f32    lane-dense output slab
    """
    B = x_ref.shape[0]
    pieces = []
    used = 0
    for kind, slot, width in layout:                       # static python metadata
        if kind == "lin":
            # nn.Linear with in_features == 1:  y = x * w + b   (pure VPU, no MXU)
            xj = x_ref[:, slot:slot + 1]                   # (B, 1)
            wj = w_ref[slot:slot + 1, :width]              # (1, width)
            bj = b_ref[slot:slot + 1, :width]              # (1, width)
            pieces.append(xj * wj + bj)                    # (B, width)
        else:
            # nn.Embedding: SMEM-indexed dynamic row gather from the stacked tables.
            base = slot * v_pad
            rows = []
            for bb in range(B):                            # B is small & static -> unrolled
                r = base + idx_ref[slot, bb]               # scalar index math in SMEM/sreg
                rows.append(tab_ref[pl.ds(r, 1), :width])  # (1, width) dynamic sublane load
            pieces.append(jnp.concatenate(rows, axis=0))   # (B, width)
        used += width
    if out_pad > used:
        pieces.append(jnp.zeros((B, out_pad - used), jnp.float32))
    # Assemble the full row in registers and store once (lane-dense, unmasked vst).
    o_ref[...] = jnp.concatenate(pieces, axis=-1)


def fused_encode(idx, dense_x, w_slab, b_slab, tables, *, layout, v_pad, out_pad):
    B = dense_x.shape[0]
    kernel = functools.partial(_fused_encoder_kernel,
                               layout=layout, v_pad=v_pad, out_pad=out_pad)
    bytes_accessed = 4 * (idx.size + dense_x.size + w_slab.size + b_slab.size
                          + tables.size + B * out_pad)
    return pl.pallas_call(
        kernel,
        out_shape=jax.ShapeDtypeStruct((B, out_pad), jnp.float32),
        in_specs=[
            pl.BlockSpec(memory_space=pltpu.MemorySpace.SMEM),   # indices -> SMEM
            pl.BlockSpec(memory_space=pltpu.MemorySpace.VMEM),   # dense inputs
            pl.BlockSpec(memory_space=pltpu.MemorySpace.VMEM),   # packed weights
            pl.BlockSpec(memory_space=pltpu.MemorySpace.VMEM),   # packed biases
            pl.BlockSpec(memory_space=pltpu.MemorySpace.VMEM),   # stacked tables
        ],
        out_specs=pl.BlockSpec(memory_space=pltpu.MemorySpace.VMEM),
        cost_estimate=pl.CostEstimate(flops=2 * B * out_pad,
                                      transcendentals=0,
                                      bytes_accessed=int(bytes_accessed)),
    )(idx, dense_x, w_slab, b_slab, tables)


# ----------------------------------------------------------------------------
# FeatureEncoder (parameter construction + one-time packing + forward dispatch)
# ----------------------------------------------------------------------------

FEATURE_SPECS = (
    ('media_type',        'emb'),
    ('temperature',       'lin'),
    ('pre_culture_time',  'lin'),
    ('pre_culture_od600', 'lin'),
    ('drug_culture_time', 'lin'),
    ('drug_name',         'emb'),
    ('concentration',     'lin'),
    ('carbon_source',     'emb'),
    ('nitrogen_source',   'emb'),
)


class FeatureEncoder:
    """JAX/Pallas port of the PyTorch FeatureEncoder module (fused forward)."""

    def __init__(self, config, key):
        cfg = {
            'media_type':        config['media_type'],
            'temperature':       config['temperature'],
            'pre_culture_time':  config['pre_culture']['time'],
            'pre_culture_od600': config['pre_culture']['od600'],
            'drug_culture_time': config['drug_culture']['time'],
            'drug_name':         config['drug_culture']['drug_name'],
            'concentration':     config['drug_culture']['concentration'],
            'carbon_source':     config['carbon_source'],
            'nitrogen_source':   config['nitrogen_source'],
        }

        keys = jax.random.split(key, len(FEATURE_SPECS))
        self.kinds = {}
        self.params = {}   # name -> table  |  (w, b)
        for (name, kind), k in zip(FEATURE_SPECS, keys):
            c = cfg[name]
            if kind == 'emb':
                table = jax.random.normal(k, (c['num_embeddings'], c['embedding_dim']),
                                          jnp.float32)
                pad_idx = c.get('padding_idx')
                if pad_idx is not None:
                    table = table.at[pad_idx].set(0.0)   # nn.Embedding padding_idx row
                self.params[name] = table
            else:
                # TODO(synk): fused kernel only packs scalar (in_features == 1) linears.
                assert c['in_features'] == 1, "fused path assumes in_features == 1"
                k_w, k_b = jax.random.split(k)
                bound = 1.0 / (c['in_features'] ** 0.5)
                w = jax.random.uniform(k_w, (c['out_features'], c['in_features']),
                                       jnp.float32, -bound, bound)
                b = jax.random.uniform(k_b, (c['out_features'],),
                                       jnp.float32, -bound, bound)
                self.params[name] = (w, b)
            self.kinds[name] = kind

        # ---- one-time layout + parameter packing (hoisted out of the forward) ----
        self.emb_names = [n for n, k in FEATURE_SPECS if k == 'emb']
        self.lin_names = [n for n, k in FEATURE_SPECS if k == 'lin']
        self.emb_slot = {n: i for i, n in enumerate(self.emb_names)}
        self.lin_slot = {n: i for i, n in enumerate(self.lin_names)}
        self.n_emb = len(self.emb_names)
        self.lin_pad = _round_up(len(self.lin_names), 8)

        self.widths = {}
        for name, kind in FEATURE_SPECS:
            self.widths[name] = (self.params[name].shape[1] if kind == 'emb'
                                 else self.params[name][0].shape[0])

        layout, self.offsets, off = [], {}, 0
        for name, kind in FEATURE_SPECS:
            slot = self.emb_slot[name] if kind == 'emb' else self.lin_slot[name]
            layout.append((kind, slot, self.widths[name]))
            self.offsets[name] = off
            off += self.widths[name]
        self.layout = tuple(layout)
        self.out_pad = max(128, _round_up(off, 128))       # lane-dense output slab

        d_lin = max(self.widths[n] for n in self.lin_names)
        d_emb = max(self.widths[n] for n in self.emb_names)

        w_slab = jnp.zeros((self.lin_pad, d_lin), jnp.float32)
        b_slab = jnp.zeros((self.lin_pad, d_lin), jnp.float32)
        for n in self.lin_names:
            w, b = self.params[n]
            j = self.lin_slot[n]
            w_slab = w_slab.at[j, :w.shape[0]].set(w[:, 0])
            b_slab = b_slab.at[j, :b.shape[0]].set(b)
        self.w_slab = w_slab
        self.b_slab = b_slab

        self.v_pad = _round_up(max(self.params[n].shape[0] for n in self.emb_names), 8)
        tabs = jnp.zeros((self.n_emb * self.v_pad, d_emb), jnp.float32)
        for n in self.emb_names:
            t = self.params[n]
            e = self.emb_slot[n]
            tabs = tabs.at[e * self.v_pad: e * self.v_pad + t.shape[0], :t.shape[1]].set(t)
        self.tables = tabs

    def __call__(self, features):
        batch = None
        for name, _ in FEATURE_SPECS:
            if name in features:
                batch = int(features[name].shape[0])
                break
        if batch is None:
            return {}

        # Pack runtime inputs (missing features get zeros / index 0; their outputs
        # are computed but never returned — matches the PyTorch forward's dict filter).
        cols = []
        for n in self.lin_names:
            if n in features:
                cols.append(jnp.asarray(features[n], jnp.float32).reshape(batch, 1))
            else:
                cols.append(jnp.zeros((batch, 1), jnp.float32))
        if self.lin_pad > len(self.lin_names):
            cols.append(jnp.zeros((batch, self.lin_pad - len(self.lin_names)), jnp.float32))
        dense_x = jnp.concatenate(cols, axis=1)

        rows = []
        for n in self.emb_names:
            if n in features:
                rows.append(jnp.asarray(features[n], jnp.int32).reshape(batch))
            else:
                rows.append(jnp.zeros((batch,), jnp.int32))
        idx = jnp.stack(rows, axis=0)

        out = fused_encode(idx, dense_x, self.w_slab, self.b_slab, self.tables,
                           layout=self.layout, v_pad=self.v_pad, out_pad=self.out_pad)

        encoded = {}
        for n, _ in FEATURE_SPECS:
            if n in features:
                off = self.offsets[n]
                encoded[n] = out[:, off:off + self.widths[n]]
        return encoded


# ----------------------------------------------------------------------------
# main
# ----------------------------------------------------------------------------

if __name__ == "__main__":
    B = 8  # batch

    config = {
        'media_type':      {'num_embeddings': 8,  'embedding_dim': 16, 'padding_idx': 0},
        'temperature':     {'in_features': 1, 'out_features': 16},
        'pre_culture':     {'time':  {'in_features': 1, 'out_features': 16},
                            'od600': {'in_features': 1, 'out_features': 16}},
        'drug_culture':    {'time':          {'in_features': 1, 'out_features': 16},
                            'drug_name':     {'num_embeddings': 12, 'embedding_dim': 16, 'padding_idx': 0},
                            'concentration': {'in_features': 1, 'out_features': 16}},
        'carbon_source':   {'num_embeddings': 6, 'embedding_dim': 16, 'padding_idx': 0},
        'nitrogen_source': {'num_embeddings': 6, 'embedding_dim': 16, 'padding_idx': 0},
    }

    root = jax.random.PRNGKey(0)
    k_params, k_feat = jax.random.split(root)
    encoder = FeatureEncoder(config, k_params)

    fk = jax.random.split(k_feat, 9)
    features = {
        'media_type':        jax.random.randint(fk[0], (B,), 0, 8),
        'temperature':       jax.random.normal(fk[1], (B, 1), jnp.float32),
        'pre_culture_time':  jax.random.normal(fk[2], (B, 1), jnp.float32),
        'pre_culture_od600': jax.random.normal(fk[3], (B, 1), jnp.float32),
        'drug_culture_time': jax.random.normal(fk[4], (B, 1), jnp.float32),
        'concentration':     jax.random.normal(fk[5], (B, 1), jnp.float32),
        'drug_name':         jax.random.randint(fk[6], (B,), 0, 12),
        'carbon_source':     jax.random.randint(fk[7], (B,), 0, 6),
        'nitrogen_source':   jax.random.randint(fk[8], (B,), 0, 6),
    }

    encoded = encoder(features)
    encoded = jax.tree_util.tree_map(jax.block_until_ready, encoded)

    # Correctness check against a pure-JAX reference of the PyTorch forward.
    for name, kind in encoder.kinds.items():
        if kind == "emb":
            ref = encoder.params[name][jnp.asarray(features[name], jnp.int32)]
        else:
            w, b = encoder.params[name]
            x = jnp.asarray(features[name], jnp.float32)
            # in_features == 1:  x @ W^T + b  ==  x * w[:, 0] + b
            ref = x * w[:, 0][None, :] + b[None, :]
        assert encoded[name].shape == ref.shape, name
        assert jnp.allclose(encoded[name], ref, atol=1e-5), name

    print("KERNEL_OK")
</pallas_src>

<mosaic_0001>
module attributes {stable_mosaic.version = 11 : i64} {
  func.func @_fused_encoder_kernel(%arg0: memref<4x8xi32, #tpu.memory_space<smem>>, %arg1: memref<8x8xf32, #tpu.memory_space<vmem>>, %arg2: memref<8x16xf32, #tpu.memory_space<vmem>>, %arg3: memref<8x16xf32, #tpu.memory_space<vmem>>, %arg4: memref<64x16xf32, #tpu.memory_space<vmem>>, %arg5: memref<8x256xf32, #tpu.memory_space<vmem>>) attributes {dimension_semantics = [], scalar_prefetch = 0 : i64, scratch_operands = 0 : i64, tpu.core_type = #tpu.core_type<tc>} {
    %c0 = arith.constant 0 : index
    %c0_0 = arith.constant 0 : index
    %0 = memref.load %arg0[%c0, %c0_0] : memref<4x8xi32, #tpu.memory_space<smem>>
    %c0_i32 = arith.constant 0 : i32
    %1 = arith.addi %c0_i32, %0 : i32
    %2 = arith.index_cast %1 : i32 to index
    %c0_1 = arith.constant 0 : index
    %3 = vector.load %arg4[%2, %c0_1] : memref<64x16xf32, #tpu.memory_space<vmem>>, vector<1x16xf32>
    %c0_2 = arith.constant 0 : index
    %c1 = arith.constant 1 : index
    %4 = memref.load %arg0[%c0_2, %c1] : memref<4x8xi32, #tpu.memory_space<smem>>
    %c0_i32_3 = arith.constant 0 : i32
    %5 = arith.addi %c0_i32_3, %4 : i32
    %6 = arith.index_cast %5 : i32 to index
    %c0_4 = arith.constant 0 : index
    %7 = vector.load %arg4[%6, %c0_4] : memref<64x16xf32, #tpu.memory_space<vmem>>, vector<1x16xf32>
    %c0_5 = arith.constant 0 : index
    %c2 = arith.constant 2 : index
    %8 = memref.load %arg0[%c0_5, %c2] : memref<4x8xi32, #tpu.memory_space<smem>>
    %c0_i32_6 = arith.constant 0 : i32
    %9 = arith.addi %c0_i32_6, %8 : i32
    %10 = arith.index_cast %9 : i32 to index
    %c0_7 = arith.constant 0 : index
    %11 = vector.load %arg4[%10, %c0_7] : memref<64x16xf32, #tpu.memory_space<vmem>>, vector<1x16xf32>
    %c0_8 = arith.constant 0 : index
    %c3 = arith.constant 3 : index
    %12 = memref.load %arg0[%c0_8, %c3] : memref<4x8xi32, #tpu.memory_space<smem>>
    %c0_i32_9 = arith.constant 0 : i32
    %13 = arith.addi %c0_i32_9, %12 : i32
    %14 = arith.index_cast %13 : i32 to index
    %c0_10 = arith.constant 0 : index
    %15 = vector.load %arg4[%14, %c0_10] : memref<64x16xf32, #tpu.memory_space<vmem>>, vector<1x16xf32>
    %c0_11 = arith.constant 0 : index
    %c4 = arith.constant 4 : index
    %16 = memref.load %arg0[%c0_11, %c4] : memref<4x8xi32, #tpu.memory_space<smem>>
    %c0_i32_12 = arith.constant 0 : i32
    %17 = arith.addi %c0_i32_12, %16 : i32
    %18 = arith.index_cast %17 : i32 to index
    %c0_13 = arith.constant 0 : index
    %19 = vector.load %arg4[%18, %c0_13] : memref<64x16xf32, #tpu.memory_space<vmem>>, vector<1x16xf32>
    %c0_14 = arith.constant 0 : index
    %c5 = arith.constant 5 : index
    %20 = memref.load %arg0[%c0_14, %c5] : memref<4x8xi32, #tpu.memory_space<smem>>
    %c0_i32_15 = arith.constant 0 : i32
    %21 = arith.addi %c0_i32_15, %20 : i32
    %22 = arith.index_cast %21 : i32 to index
    %c0_16 = arith.constant 0 : index
    %23 = vector.load %arg4[%22, %c0_16] : memref<64x16xf32, #tpu.memory_space<vmem>>, vector<1x16xf32>
    %c0_17 = arith.constant 0 : index
    %c6 = arith.constant 6 : index
    %24 = memref.load %arg0[%c0_17, %c6] : memref<4x8xi32, #tpu.memory_space<smem>>
    %c0_i32_18 = arith.constant 0 : i32
    %25 = arith.addi %c0_i32_18, %24 : i32
    %26 = arith.index_cast %25 : i32 to index
    %c0_19 = arith.constant 0 : index
    %27 = vector.load %arg4[%26, %c0_19] : memref<64x16xf32, #tpu.memory_space<vmem>>, vector<1x16xf32>
    %c0_20 = arith.constant 0 : index
    %c7 = arith.constant 7 : index
    %28 = memref.load %arg0[%c0_20, %c7] : memref<4x8xi32, #tpu.memory_space<smem>>
    %c0_i32_21 = arith.constant 0 : i32
    %29 = arith.addi %c0_i32_21, %28 : i32
    %30 = arith.index_cast %29 : i32 to index
    %c0_22 = arith.constant 0 : index
    %31 = vector.load %arg4[%30, %c0_22] : memref<64x16xf32, #tpu.memory_space<vmem>>, vector<1x16xf32>
    %32 = tpu.concatenate %3, %7, %11, %15, %19, %23, %27, %31 in 0 : vector<1x16xf32>, vector<1x16xf32>, vector<1x16xf32>, vector<1x16xf32>, vector<1x16xf32>, vector<1x16xf32>, vector<1x16xf32>, vector<1x16xf32> -> vector<8x16xf32>
    %c0_23 = arith.constant 0 : index
    %c0_24 = arith.constant 0 : index
    %33 = vector.load %arg1[%c0_23, %c0_24] : memref<8x8xf32, #tpu.memory_space<vmem>>, vector<8x1xf32>
    %c0_25 = arith.constant 0 : index
    %c0_26 = arith.constant 0 : index
    %34 = vector.load %arg2[%c0_25, %c0_26] : memref<8x16xf32, #tpu.memory_space<vmem>>, vector<1x16xf32>
    %c0_27 = arith.constant 0 : index
    %c0_28 = arith.constant 0 : index
    %35 = vector.load %arg3[%c0_27, %c0_28] : memref<8x16xf32, #tpu.memory_space<vmem>>, vector<1x16xf32>
    %36 = vector.broadcast %33 : vector<8x1xf32> to vector<8x16xf32>
    %37 = vector.broadcast %34 : vector<1x16xf32> to vector<8x16xf32>
    %38 = arith.mulf %36, %37 : vector<8x16xf32>
    %39 = vector.broadcast %35 : vector<1x16xf32> to vector<8x16xf32>
    %40 = arith.addf %38, %39 : vector<8x16xf32>
    %c0_29 = arith.constant 0 : index
    %c1_30 = arith.constant 1 : index
    %41 = vector.load %arg1[%c0_29, %c1_30] : memref<8x8xf32, #tpu.memory_space<vmem>>, vector<8x1xf32>
    %c1_31 = arith.constant 1 : index
    %c0_32 = arith.constant 0 : index
    %42 = vector.load %arg2[%c1_31, %c0_32] : memref<8x16xf32, #tpu.memory_space<vmem>>, vector<1x16xf32>
    %c1_33 = arith.constant 1 : index
    %c0_34 = arith.constant 0 : index
    %43 = vector.load %arg3[%c1_33, %c0_34] : memref<8x16xf32, #tpu.memory_space<vmem>>, vector<1x16xf32>
    %44 = vector.broadcast %41 : vector<8x1xf32> to vector<8x16xf32>
    %45 = vector.broadcast %42 : vector<1x16xf32> to vector<8x16xf32>
    %46 = arith.mulf %44, %45 : vector<8x16xf32>
    %47 = vector.broadcast %43 : vector<1x16xf32> to vector<8x16xf32>
    %48 = arith.addf %46, %47 : vector<8x16xf32>
    %c0_35 = arith.constant 0 : index
    %c2_36 = arith.constant 2 : index
    %49 = vector.load %arg1[%c0_35, %c2_36] : memref<8x8xf32, #tpu.memory_space<vmem>>, vector<8x1xf32>
    %c2_37 = arith.constant 2 : index
    %c0_38 = arith.constant 0 : index
    %50 = vector.load %arg2[%c2_37, %c0_38] : memref<8x16xf32, #tpu.memory_space<vmem>>, vector<1x16xf32>
    %c2_39 = arith.constant 2 : index
    %c0_40 = arith.constant 0 : index
    %51 = vector.load %arg3[%c2_39, %c0_40] : memref<8x16xf32, #tpu.memory_space<vmem>>, vector<1x16xf32>
    %52 = vector.broadcast %49 : vector<8x1xf32> to vector<8x16xf32>
    %53 = vector.broadcast %50 : vector<1x16xf32> to vector<8x16xf32>
    %54 = arith.mulf %52, %53 : vector<8x16xf32>
    %55 = vector.broadcast %51 : vector<1x16xf32> to vector<8x16xf32>
    %56 = arith.addf %54, %55 : vector<8x16xf32>
    %c0_41 = arith.constant 0 : index
    %c3_42 = arith.constant 3 : index
    %57 = vector.load %arg1[%c0_41, %c3_42] : memref<8x8xf32, #tpu.memory_space<vmem>>, vector<8x1xf32>
    %c3_43 = arith.constant 3 : index
    %c0_44 = arith.constant 0 : index
    %58 = vector.load %arg2[%c3_43, %c0_44] : memref<8x16xf32, #tpu.memory_space<vmem>>, vector<1x16xf32>
    %c3_45 = arith.constant 3 : index
    %c0_46 = arith.constant 0 : index
    %59 = vector.load %arg3[%c3_45, %c0_46] : memref<8x16xf32, #tpu.memory_space<vmem>>, vector<1x16xf32>
    %60 = vector.broadcast %57 : vector<8x1xf32> to vector<8x16xf32>
    %61 = vector.broadcast %58 : vector<1x16xf32> to vector<8x16xf32>
    %62 = arith.mulf %60, %61 : vector<8x16xf32>
    %63 = vector.broadcast %59 : vector<1x16xf32> to vector<8x16xf32>
    %64 = arith.addf %62, %63 : vector<8x16xf32>
    %c1_47 = arith.constant 1 : index
    %c0_48 = arith.constant 0 : index
    %65 = memref.load %arg0[%c1_47, %c0_48] : memref<4x8xi32, #tpu.memory_space<smem>>
    %c16_i32 = arith.constant 16 : i32
    %66 = arith.addi %c16_i32, %65 : i32
    %67 = arith.index_cast %66 : i32 to index
    %c0_49 = arith.constant 0 : index
    %68 = vector.load %arg4[%67, %c0_49] : memref<64x16xf32, #tpu.memory_space<vmem>>, vector<1x16xf32>
    %c1_50 = arith.constant 1 : index
    %c1_51 = arith.constant 1 : index
    %69 = memref.load %arg0[%c1_50, %c1_51] : memref<4x8xi32, #tpu.memory_space<smem>>
    %c16_i32_52 = arith.constant 16 : i32
    %70 = arith.addi %c16_i32_52, %69 : i32
    %71 = arith.index_cast %70 : i32 to index
    %c0_53 = arith.constant 0 : index
    %72 = vector.load %arg4[%71, %c0_53] : memref<64x16xf32, #tpu.memory_space<vmem>>, vector<1x16xf32>
    %c1_54 = arith.constant 1 : index
    %c2_55 = arith.constant 2 : index
    %73 = memref.load %arg0[%c1_54, %c2_55] : memref<4x8xi32, #tpu.memory_space<smem>>
    %c16_i32_56 = arith.constant 16 : i32
    %74 = arith.addi %c16_i32_56, %73 : i32
    %75 = arith.index_cast %74 : i32 to index
    %c0_57 = arith.constant 0 : index
    %76 = vector.load %arg4[%75, %c0_57] : memref<64x16xf32, #tpu.memory_space<vmem>>, vector<1x16xf32>
    %c1_58 = arith.constant 1 : index
    %c3_59 = arith.constant 3 : index
    %77 = memref.load %arg0[%c1_58, %c3_59] : memref<4x8xi32, #tpu.memory_space<smem>>
    %c16_i32_60 = arith.constant 16 : i32
    %78 = arith.addi %c16_i32_60, %77 : i32
    %79 = arith.index_cast %78 : i32 to index
    %c0_61 = arith.constant 0 : index
    %80 = vector.load %arg4[%79, %c0_61] : memref<64x16xf32, #tpu.memory_space<vmem>>, vector<1x16xf32>
    %c1_62 = arith.constant 1 : index
    %c4_63 = arith.constant 4 : index
    %81 = memref.load %arg0[%c1_62, %c4_63] : memref<4x8xi32, #tpu.memory_space<smem>>
    %c16_i32_64 = arith.constant 16 : i32
    %82 = arith.addi %c16_i32_64, %81 : i32
    %83 = arith.index_cast %82 : i32 to index
    %c0_65 = arith.constant 0 : index
    %84 = vector.load %arg4[%83, %c0_65] : memref<64x16xf32, #tpu.memory_space<vmem>>, vector<1x16xf32>
    %c1_66 = arith.constant 1 : index
    %c5_67 = arith.constant 5 : index
    %85 = memref.load %arg0[%c1_66, %c5_67] : memref<4x8xi32, #tpu.memory_space<smem>>
    %c16_i32_68 = arith.constant 16 : i32
    %86 = arith.addi %c16_i32_68, %85 : i32
    %87 = arith.index_cast %86 : i32 to index
    %c0_69 = arith.constant 0 : index
    %88 = vector.load %arg4[%87, %c0_69] : memref<64x16xf32, #tpu.memory_space<vmem>>, vector<1x16xf32>
    %c1_70 = arith.constant 1 : index
    %c6_71 = arith.constant 6 : index
    %89 = memref.load %arg0[%c1_70, %c6_71] : memref<4x8xi32, #tpu.memory_space<smem>>
    %c16_i32_72 = arith.constant 16 : i32
    %90 = arith.addi %c16_i32_72, %89 : i32
    %91 = arith.index_cast %90 : i32 to index
    %c0_73 = arith.constant 0 : index
    %92 = vector.load %arg4[%91, %c0_73] : memref<64x16xf32, #tpu.memory_space<vmem>>, vector<1x16xf32>
    %c1_74 = arith.constant 1 : index
    %c7_75 = arith.constant 7 : index
    %93 = memref.load %arg0[%c1_74, %c7_75] : memref<4x8xi32, #tpu.memory_space<smem>>
    %c16_i32_76 = arith.constant 16 : i32
    %94 = arith.addi %c16_i32_76, %93 : i32
    %95 = arith.index_cast %94 : i32 to index
    %c0_77 = arith.constant 0 : index
    %96 = vector.load %arg4[%95, %c0_77] : memref<64x16xf32, #tpu.memory_space<vmem>>, vector<1x16xf32>
    %97 = tpu.concatenate %68, %72, %76, %80, %84, %88, %92, %96 in 0 : vector<1x16xf32>, vector<1x16xf32>, vector<1x16xf32>, vector<1x16xf32>, vector<1x16xf32>, vector<1x16xf32>, vector<1x16xf32>, vector<1x16xf32> -> vector<8x16xf32>
    %c0_78 = arith.constant 0 : index
    %c4_79 = arith.constant 4 : index
    %98 = vector.load %arg1[%c0_78, %c4_79] : memref<8x8xf32, #tpu.memory_space<vmem>>, vector<8x1xf32>
    %c4_80 = arith.constant 4 : index
    %c0_81 = arith.constant 0 : index
    %99 = vector.load %arg2[%c4_80, %c0_81] : memref<8x16xf32, #tpu.memory_space<vmem>>, vector<1x16xf32>
    %c4_82 = arith.constant 4 : index
    %c0_83 = arith.constant 0 : index
    %100 = vector.load %arg3[%c4_82, %c0_83] : memref<8x16xf32, #tpu.memory_space<vmem>>, vector<1x16xf32>
    %101 = vector.broadcast %98 : vector<8x1xf32> to vector<8x16xf32>
    %102 = vector.broadcast %99 : vector<1x16xf32> to vector<8x16xf32>
    %103 = arith.mulf %101, %102 : vector<8x16xf32>
    %104 = vector.broadcast %100 : vector<1x16xf32> to vector<8x16xf32>
    %105 = arith.addf %103, %104 : vector<8x16xf32>
    %c2_84 = arith.constant 2 : index
    %c0_85 = arith.constant 0 : index
    %106 = memref.load %arg0[%c2_84, %c0_85] : memref<4x8xi32, #tpu.memory_space<smem>>
    %c32_i32 = arith.constant 32 : i32
    %107 = arith.addi %c32_i32, %106 : i32
    %108 = arith.index_cast %107 : i32 to index
    %c0_86 = arith.constant 0 : index
    %109 = vector.load %arg4[%108, %c0_86] : memref<64x16xf32, #tpu.memory_space<vmem>>, vector<1x16xf32>
    %c2_87 = arith.constant 2 : index
    %c1_88 = arith.constant 1 : index
    %110 = memref.load %arg0[%c2_87, %c1_88] : memref<4x8xi32, #tpu.memory_space<smem>>
    %c32_i32_89 = arith.constant 32 : i32
    %111 = arith.addi %c32_i32_89, %110 : i32
    %112 = arith.index_cast %111 : i32 to index
    %c0_90 = arith.constant 0 : index
    %113 = vector.load %arg4[%112, %c0_90] : memref<64x16xf32, #tpu.memory_space<vmem>>, vector<1x16xf32>
    %c2_91 = arith.constant 2 : index
    %c2_92 = arith.constant 2 : index
    %114 = memref.load %arg0[%c2_91, %c2_92] : memref<4x8xi32, #tpu.memory_space<smem>>
    %c32_i32_93 = arith.constant 32 : i32
    %115 = arith.addi %c32_i32_93, %114 : i32
    %116 = arith.index_cast %115 : i32 to index
    %c0_94 = arith.constant 0 : index
    %117 = vector.load %arg4[%116, %c0_94] : memref<64x16xf32, #tpu.memory_space<vmem>>, vector<1x16xf32>
    %c2_95 = arith.constant 2 : index
    %c3_96 = arith.constant 3 : index
    %118 = memref.load %arg0[%c2_95, %c3_96] : memref<4x8xi32, #tpu.memory_space<smem>>
    %c32_i32_97 = arith.constant 32 : i32
    %119 = arith.addi %c32_i32_97, %118 : i32
    %120 = arith.index_cast %119 : i32 to index
    %c0_98 = arith.constant 0 : index
    %121 = vector.load %arg4[%120, %c0_98] : memref<64x16xf32, #tpu.memory_space<vmem>>, vector<1x16xf32>
    %c2_99 = arith.constant 2 : index
    %c4_100 = arith.constant 4 : index
    %122 = memref.load %arg0[%c2_99, %c4_100] : memref<4x8xi32, #tpu.memory_space<smem>>
    %c32_i32_101 = arith.constant 32 : i32
    %123 = arith.addi %c32_i32_101, %122 : i32
    %124 = arith.index_cast %123 : i32 to index
    %c0_102 = arith.constant 0 : index
    %125 = vector.load %arg4[%124, %c0_102] : memref<64x16xf32, #tpu.memory_space<vmem>>, vector<1x16xf32>
    %c2_103 = arith.constant 2 : index
    %c5_104 = arith.constant 5 : index
    %126 = memref.load %arg0[%c2_103, %c5_104] : memref<4x8xi32, #tpu.memory_space<smem>>
    %c32_i32_105 = arith.constant 32 : i32
    %127 = arith.addi %c32_i32_105, %126 : i32
    %128 = arith.index_cast %127 : i32 to index
    %c0_106 = arith.constant 0 : index
    %129 = vector.load %arg4[%128, %c0_106] : memref<64x16xf32, #tpu.memory_space<vmem>>, vector<1x16xf32>
    %c2_107 = arith.constant 2 : index
    %c6_108 = arith.constant 6 : index
    %130 = memref.load %arg0[%c2_107, %c6_108] : memref<4x8xi32, #tpu.memory_space<smem>>
    %c32_i32_109 = arith.constant 32 : i32
    %131 = arith.addi %c32_i32_109, %130 : i32
    %132 = arith.index_cast %131 : i32 to index
    %c0_110 = arith.constant 0 : index
    %133 = vector.load %arg4[%132, %c0_110] : memref<64x16xf32, #tpu.memory_space<vmem>>, vector<1x16xf32>
    %c2_111 = arith.constant 2 : index
    %c7_112 = arith.constant 7 : index
    %134 = memref.load %arg0[%c2_111, %c7_112] : memref<4x8xi32, #tpu.memory_space<smem>>
    %c32_i32_113 = arith.constant 32 : i32
    %135 = arith.addi %c32_i32_113, %134 : i32
    %136 = arith.index_cast %135 : i32 to index
    %c0_114 = arith.constant 0 : index
    %137 = vector.load %arg4[%136, %c0_114] : memref<64x16xf32, #tpu.memory_space<vmem>>, vector<1x16xf32>
    %138 = tpu.concatenate %109, %113, %117, %121, %125, %129, %133, %137 in 0 : vector<1x16xf32>, vector<1x16xf32>, vector<1x16xf32>, vector<1x16xf32>, vector<1x16xf32>, vector<1x16xf32>, vector<1x16xf32>, vector<1x16xf32> -> vector<8x16xf32>
    %c3_115 = arith.constant 3 : index
    %c0_116 = arith.constant 0 : index
    %139 = memref.load %arg0[%c3_115, %c0_116] : memref<4x8xi32, #tpu.memory_space<smem>>
    %c48_i32 = arith.constant 48 : i32
    %140 = arith.addi %c48_i32, %139 : i32
    %141 = arith.index_cast %140 : i32 to index
    %c0_117 = arith.constant 0 : index
    %142 = vector.load %arg4[%141, %c0_117] : memref<64x16xf32, #tpu.memory_space<vmem>>, vector<1x16xf32>
    %c3_118 = arith.constant 3 : index
    %c1_119 = arith.constant 1 : index
    %143 = memref.load %arg0[%c3_118, %c1_119] : memref<4x8xi32, #tpu.memory_space<smem>>
    %c48_i32_120 = arith.constant 48 : i32
    %144 = arith.addi %c48_i32_120, %143 : i32
    %145 = arith.index_cast %144 : i32 to index
    %c0_121 = arith.constant 0 : index
    %146 = vector.load %arg4[%145, %c0_121] : memref<64x16xf32, #tpu.memory_space<vmem>>, vector<1x16xf32>
    %c3_122 = arith.constant 3 : index
    %c2_123 = arith.constant 2 : index
    %147 = memref.load %arg0[%c3_122, %c2_123] : memref<4x8xi32, #tpu.memory_space<smem>>
    %c48_i32_124 = arith.constant 48 : i32
    %148 = arith.addi %c48_i32_124, %147 : i32
    %149 = arith.index_cast %148 : i32 to index
    %c0_125 = arith.constant 0 : index
    %150 = vector.load %arg4[%149, %c0_125] : memref<64x16xf32, #tpu.memory_space<vmem>>, vector<1x16xf32>
    %c3_126 = arith.constant 3 : index
    %c3_127 = arith.constant 3 : index
    %151 = memref.load %arg0[%c3_126, %c3_127] : memref<4x8xi32, #tpu.memory_space<smem>>
    %c48_i32_128 = arith.constant 48 : i32
    %152 = arith.addi %c48_i32_128, %151 : i32
    %153 = arith.index_cast %152 : i32 to index
    %c0_129 = arith.constant 0 : index
    %154 = vector.load %arg4[%153, %c0_129] : memref<64x16xf32, #tpu.memory_space<vmem>>, vector<1x16xf32>
    %c3_130 = arith.constant 3 : index
    %c4_131 = arith.constant 4 : index
    %155 = memref.load %arg0[%c3_130, %c4_131] : memref<4x8xi32, #tpu.memory_space<smem>>
    %c48_i32_132 = arith.constant 48 : i32
    %156 = arith.addi %c48_i32_132, %155 : i32
    %157 = arith.index_cast %156 : i32 to index
    %c0_133 = arith.constant 0 : index
    %158 = vector.load %arg4[%157, %c0_133] : memref<64x16xf32, #tpu.memory_space<vmem>>, vector<1x16xf32>
    %c3_134 = arith.constant 3 : index
    %c5_135 = arith.constant 5 : index
    %159 = memref.load %arg0[%c3_134, %c5_135] : memref<4x8xi32, #tpu.memory_space<smem>>
    %c48_i32_136 = arith.constant 48 : i32
    %160 = arith.addi %c48_i32_136, %159 : i32
    %161 = arith.index_cast %160 : i32 to index
    %c0_137 = arith.constant 0 : index
    %162 = vector.load %arg4[%161, %c0_137] : memref<64x16xf32, #tpu.memory_space<vmem>>, vector<1x16xf32>
    %c3_138 = arith.constant 3 : index
    %c6_139 = arith.constant 6 : index
    %163 = memref.load %arg0[%c3_138, %c6_139] : memref<4x8xi32, #tpu.memory_space<smem>>
    %c48_i32_140 = arith.constant 48 : i32
    %164 = arith.addi %c48_i32_140, %163 : i32
    %165 = arith.index_cast %164 : i32 to index
    %c0_141 = arith.constant 0 : index
    %166 = vector.load %arg4[%165, %c0_141] : memref<64x16xf32, #tpu.memory_space<vmem>>, vector<1x16xf32>
    %c3_142 = arith.constant 3 : index
    %c7_143 = arith.constant 7 : index
    %167 = memref.load %arg0[%c3_142, %c7_143] : memref<4x8xi32, #tpu.memory_space<smem>>
    %c48_i32_144 = arith.constant 48 : i32
    %168 = arith.addi %c48_i32_144, %167 : i32
    %169 = arith.index_cast %168 : i32 to index
    %c0_145 = arith.constant 0 : index
    %170 = vector.load %arg4[%169, %c0_145] : memref<64x16xf32, #tpu.memory_space<vmem>>, vector<1x16xf32>
    %171 = tpu.concatenate %142, %146, %150, %154, %158, %162, %166, %170 in 0 : vector<1x16xf32>, vector<1x16xf32>, vector<1x16xf32>, vector<1x16xf32>, vector<1x16xf32>, vector<1x16xf32>, vector<1x16xf32>, vector<1x16xf32> -> vector<8x16xf32>
    %cst = arith.constant 0.000000e+00 : f32
    %172 = vector.broadcast %cst : f32 to vector<8x112xf32>
    %173 = tpu.concatenate %32, %40, %48, %56, %64, %97, %105, %138, %171, %172 in 1 : vector<8x16xf32>, vector<8x16xf32>, vector<8x16xf32>, vector<8x16xf32>, vector<8x16xf32>, vector<8x16xf32>, vector<8x16xf32>, vector<8x16xf32>, vector<8x16xf32>, vector<8x112xf32> -> vector<8x256xf32>
    %c0_146 = arith.constant 0 : index
    %c0_147 = arith.constant 0 : index
    %174 = vector.load %arg5[%c0_146, %c0_147] : memref<8x256xf32, #tpu.memory_space<vmem>>, vector<8x256xf32>
    tpu.vector_store %arg5[%c0_146, %c0_147], %173 {strides = array<i32>} : memref<8x256xf32, #tpu.memory_space<vmem>>, vector<8x256xf32>,
    return
  }
}

</mosaic_0001>

<llo_original>
// kernel: tpu_custom_call.1
$region0: #{tpu_custom_call.1}
  #allocation0 [shape = 'u32[]', space=smem, size = 0x4, offset = 0x4, fixed_abs, tag = 'smem constant byte address 0x4 - core index']
  #allocation1 [shape = 'u32[144,128]{1,0:T(1,128)}', space=vmem, size = 0x12000, scoped, tag = 'internal scratch']
  %s0 = inlined_call_operand.vmem [shape: s32[4,8], index: 0, kind: input, shape index: {}]
  %s1 = inlined_call_operand.vmem [shape: f32[8,8], index: 1, kind: input, shape index: {}]
  %s2 = inlined_call_operand.vmem [shape: f32[8,16], index: 2, kind: input, shape index: {}]
  %s3 = inlined_call_operand.vmem [shape: f32[8,16], index: 3, kind: input, shape index: {}]
  %s4 = inlined_call_operand.vmem [shape: f32[64,16], index: 4, kind: input, shape index: {}]
  %s5 = inlined_call_operand.hbm [shape: f32[8,256], index: 5, kind: output, shape index: {}]
  %s6 = sld [smem:[#allocation0]]
  $region34: #{tpu_custom_call.1} parent=0
    _
  %s8 = ssub.s32 1, %s6
  %s9 = scalar_select 0, %s8, %s6
  $region1: #{tpu_custom_call.1} parent=0
    #allocation2 [shape = 'u8[2048]{0}', space=smem, size = 0x800, scoped, tag = 'input window, operand 0, single buffered']
    #allocation3 [shape = 's32[1]{0}', space=sflag, size = 0x4, scoped, tag = 'scoped memory for tpu_custom_call.1']
    #allocation4 [shape = 's32[1]{0}', space=sflag, size = 0x4, scoped, tag = 'scoped memory for tpu_custom_call.1']
    #allocation5 [shape = 'u8[8192]{0}', space=vmem, size = 0x2000, scoped, tag = 'output window, operand 0, single buffered']
    %10 = vsyncpa [#allocation4], 0
    %11 = vsyncpa [#allocation3], 0
    // Predicated region
    $region2: #{tpu_custom_call.1} parent=1 // pred_check
      _
    $region3: #{tpu_custom_call.1} parent=1 // pred_check_branch
      %13 = sbr.rel (0) target = $region5
    $region4: #{tpu_custom_call.1} parent=1 // pred_region
      %s15 = ssub.s32 64, 64
      %16 = vsyncadd [#allocation4], %s15
      %s18 = sshll.u32 %s0, 4
      %s19 = int_to_ptr.vmem [resolvable:$true] %s18
      %21 = dma.vmem_to_smem %s19, 64, [#allocation2], [#allocation4]
    $region5: #{tpu_custom_call.1} parent=1 // pred_fallthru
      _
    // Predicated region
    $region6: #{tpu_custom_call.1} parent=1 // pred_check
      _
    $region7: #{tpu_custom_call.1} parent=1 // pred_check_branch
      %23 = sbr.rel (0) target = $region9
    $region8: #{tpu_custom_call.1} parent=1 // pred_region
      _
    $region9: #{tpu_custom_call.1} parent=1 // pred_fallthru
      _
    // Predicated region
    $region10: #{tpu_custom_call.1} parent=1 // pred_check
      _
    $region11: #{tpu_custom_call.1} parent=1 // pred_check_branch
      %25 = sbr.rel (0) target = $region13
    $region12: #{tpu_custom_call.1} parent=1 // pred_region
      _
    $region13: #{tpu_custom_call.1} parent=1 // pred_fallthru
      _
    // Predicated region
    $region14: #{tpu_custom_call.1} parent=1 // pred_check
      _
    $region15: #{tpu_custom_call.1} parent=1 // pred_check_branch
      %27 = sbr.rel (0) target = $region17
    $region16: #{tpu_custom_call.1} parent=1 // pred_region
      _
    $region17: #{tpu_custom_call.1} parent=1 // pred_fallthru
      _
    // Predicated region
    $region18: #{tpu_custom_call.1} parent=1 // pred_check
      _
    $region19: #{tpu_custom_call.1} parent=1 // pred_check_branch
      %29 = sbr.rel (0) target = $region21
    $region20: #{tpu_custom_call.1} parent=1 // pred_region
      _
    $region21: #{tpu_custom_call.1} parent=1 // pred_fallthru
      _
    // Predicated region
    $region22: #{tpu_custom_call.1} parent=1 // pred_check
      _
    $region23: #{tpu_custom_call.1} parent=1 // pred_check_branch
      %31 = sbr.rel (0) target = $region25
    $region24: #{tpu_custom_call.1} parent=1 // pred_region
      %32 = dma.done [#allocation4], 64
    $region25: #{tpu_custom_call.1} parent=1 // pred_fallthru
      _
    %33 = sfence
    %s34 = sld [smem:[#allocation2]]
    %s35 = scalar_lea.vmem %s4, %s34
    %v36 = vld [vmem:[%s35] sm:$0x1]
    %s37 = sld [smem:[#allocation2 + $0x1]]
    %s38 = scalar_lea.vmem %s4, %s37
    %v39 = vld [vmem:[%s38] sm:$0x1]
    %s40 = sld [smem:[#allocation2 + $0x2]]
    %s41 = scalar_lea.vmem %s4, %s40
    %v42 = vld [vmem:[%s41] sm:$0x1]
    %s43 = sld [smem:[#allocation2 + $0x3]]
    %s44 = scalar_lea.vmem %s4, %s43
    %v45 = vld [vmem:[%s44] sm:$0x1]
    %s46 = sld [smem:[#allocation2 + $0x4]]
    %s47 = scalar_lea.vmem %s4, %s46
    %v48 = vld [vmem:[%s47] sm:$0x1]
    %s49 = sld [smem:[#allocation2 + $0x5]]
    %s50 = scalar_lea.vmem %s4, %s49
    %v51 = vld [vmem:[%s50] sm:$0x1]
    %s52 = sld [smem:[#allocation2 + $0x6]]
    %s53 = scalar_lea.vmem %s4, %s52
    %v54 = vld [vmem:[%s53] sm:$0x1]
    %s55 = sld [smem:[#allocation2 + $0x7]]
    %s56 = scalar_lea.vmem %s4, %s55
    %v57 = vld [vmem:[%s56] sm:$0x1]
    %v59 = vrot.slane %v39, 7
    %v62 = vrot.slane %v42, 6
    %v65 = vrot.slane %v45, 5
    %v68 = vrot.slane %v48, 4
    %v71 = vrot.slane %v51, 3
    %v74 = vrot.slane %v54, 2
    %v77 = vrot.slane %v57, 1
    %vm79 = vcmask 1040384
    %v80 = vsel %vm79, %v36, %v59
    %vm81 = vcmask 1041408
    %v82 = vsel %vm81, %v80, %v62
    %vm83 = vcmask 1042432
    %v84 = vsel %vm83, %v82, %v65
    %vm85 = vcmask 1043456
    %v86 = vsel %vm85, %v84, %v68
    %vm87 = vcmask 1044480
    %v88 = vsel %vm87, %v86, %v71
    %vm89 = vcmask 1045504
    %v90 = vsel %vm89, %v88, %v74
    %vm91 = vcmask 1046528
    %v92 = vsel %vm91, %v90, %v77
    %v93 = vld [vmem:[%s1] sm:$0xff]
    %v94 = vld [vmem:[%s2] sm:$0x1]
    %v95 = vld [vmem:[%s3] sm:$0x1]
    %97 = vset.pattern.permute.xlu0 0
    %98 = vperm.xlu0 %97, %v93
    %v99 = vpop.permute.xlu0 %98
    %v101 = vlaneseq
    %v102 = vshrl.u32 %v101, 7
    %v103 = vsub.s32 0, %v102
    %v104 = vrot.slane %v94, %v103
    %v105 = vmul.f32 %v99, %v104
    %v106 = vlaneseq
    %v107 = vshrl.u32 %v106, 7
    %v108 = vsub.s32 0, %v107
    %v109 = vrot.slane %v95, %v108
    %v110 = vadd.f32 %v105, %v109
    %v111 = vld [vmem:[%s2 + $0x1] sm:$0x1]
    %v112 = vld [vmem:[%s3 + $0x1] sm:$0x1]
    %113 = vset.pattern.permute.xlu0 1
    %114 = vperm.xlu0 %113, %v93
    %v115 = vpop.permute.xlu0 %114
    %v117 = vlaneseq
    %v118 = vshrl.u32 %v117, 7
    %v119 = vsub.s32 0, %v118
    %v120 = vrot.slane %v111, %v119
    %v121 = vmul.f32 %v115, %v120
    %v122 = vlaneseq
    %v123 = vshrl.u32 %v122, 7
    %v124 = vsub.s32 0, %v123
    %v125 = vrot.slane %v112, %v124
    %v126 = vadd.f32 %v121, %v125
    %v127 = vld [vmem:[%s2 + $0x2] sm:$0x1]
    %v128 = vld [vmem:[%s3 + $0x2] sm:$0x1]
    %129 = vset.pattern.permute.xlu0 2
    %130 = vperm.xlu0 %129, %v93
    %v131 = vpop.permute.xlu0 %130
    %v133 = vlaneseq
    %v134 = vshrl.u32 %v133, 7
    %v135 = vsub.s32 0, %v134
    %v136 = vrot.slane %v127, %v135
    %v137 = vmul.f32 %v131, %v136
    %v138 = vlaneseq
    %v139 = vshrl.u32 %v138, 7
    %v140 = vsub.s32 0, %v139
    %v141 = vrot.slane %v128, %v140
    %v142 = vadd.f32 %v137, %v141
    %v143 = vld [vmem:[%s2 + $0x3] sm:$0x1]
    %v144 = vld [vmem:[%s3 + $0x3] sm:$0x1]
    %145 = vset.pattern.permute.xlu0 3
    %146 = vperm.xlu0 %145, %v93
    %v147 = vpop.permute.xlu0 %146
    %v149 = vlaneseq
    %v150 = vshrl.u32 %v149, 7
    %v151 = vsub.s32 0, %v150
    %v152 = vrot.slane %v143, %v151
    %v153 = vmul.f32 %v147, %v152
    %v154 = vlaneseq
    %v155 = vshrl.u32 %v154, 7
    %v156 = vsub.s32 0, %v155
    %v157 = vrot.slane %v144, %v156
    %v158 = vadd.f32 %v153, %v157
    %s159 = sld [smem:[#allocation2 + $0x80]]
    %s160 = sadd.s32 %s159, 16
    %s161 = scalar_lea.vmem %s4, %s160
    %v162 = vld [vmem:[%s161] sm:$0x1]
    %s163 = sld [smem:[#allocation2 + $0x81]]
    %s164 = sadd.s32 %s163, 16
    %s165 = scalar_lea.vmem %s4, %s164
    %v166 = vld [vmem:[%s165] sm:$0x1]
    %s167 = sld [smem:[#allocation2 + $0x82]]
    %s168 = sadd.s32 %s167, 16
    %s169 = scalar_lea.vmem %s4, %s168
    %v170 = vld [vmem:[%s169] sm:$0x1]
    %s171 = sld [smem:[#allocation2 + $0x83]]
    %s172 = sadd.s32 %s171, 16
    %s173 = scalar_lea.vmem %s4, %s172
    %v174 = vld [vmem:[%s173] sm:$0x1]
    %s175 = sld [smem:[#allocation2 + $0x84]]
    %s176 = sadd.s32 %s175, 16
    %s177 = scalar_lea.vmem %s4, %s176
    %v178 = vld [vmem:[%s177] sm:$0x1]
    %s179 = sld [smem:[#allocation2 + $0x85]]
    %s180 = sadd.s32 %s179, 16
    %s181 = scalar_lea.vmem %s4, %s180
    %v182 = vld [vmem:[%s181] sm:$0x1]
    %s183 = sld [smem:[#allocation2 + $0x86]]
    %s184 = sadd.s32 %s183, 16
    %s185 = scalar_lea.vmem %s4, %s184
    %v186 = vld [vmem:[%s185] sm:$0x1]
    %s187 = sld [smem:[#allocation2 + $0x87]]
    %s188 = sadd.s32 %s187, 16
    %s189 = scalar_lea.vmem %s4, %s188
    %v190 = vld [vmem:[%s189] sm:$0x1]
    %v192 = vrot.slane %v166, 7
    %v195 = vrot.slane %v170, 6
    %v198 = vrot.slane %v174, 5
    %v201 = vrot.slane %v178, 4
    %v204 = vrot.slane %v182, 3
    %v207 = vrot.slane %v186, 2
    %v210 = vrot.slane %v190, 1
    %v212 = vsel %vm79, %v162, %v192
    %v213 = vsel %vm81, %v212, %v195
    %v214 = vsel %vm83, %v213, %v198
    %v215 = vsel %vm85, %v214, %v201
    %v216 = vsel %vm87, %v215, %v204
    %v217 = vsel %vm89, %v216, %v207
    %v218 = vsel %vm91, %v217, %v210
    %v219 = vld [vmem:[%s2 + $0x4] sm:$0x1]
    %v220 = vld [vmem:[%s3 + $0x4] sm:$0x1]
    %221 = vset.pattern.permute.xlu0 4
    %222 = vperm.xlu0 %221, %v93
    %v223 = vpop.permute.xlu0 %222
    %v225 = vlaneseq
    %v226 = vshrl.u32 %v225, 7
    %v227 = vsub.s32 0, %v226
    %v228 = vrot.slane %v219, %v227
    %v229 = vmul.f32 %v223, %v228
    %v230 = vlaneseq
    %v231 = vshrl.u32 %v230, 7
    %v232 = vsub.s32 0, %v231
    %v233 = vrot.slane %v220, %v232
    %v234 = vadd.f32 %v229, %v233
    %s235 = sld [smem:[#allocation2 + $0x100]]
    %s236 = sadd.s32 %s235, 32
    %s237 = scalar_lea.vmem %s4, %s236
    %v238 = vld [vmem:[%s237] sm:$0x1]
    %s239 = sld [smem:[#allocation2 + $0x101]]
    %s240 = sadd.s32 %s239, 32
    %s241 = scalar_lea.vmem %s4, %s240
    %v242 = vld [vmem:[%s241] sm:$0x1]
    %s243 = sld [smem:[#allocation2 + $0x102]]
    %s244 = sadd.s32 %s243, 32
    %s245 = scalar_lea.vmem %s4, %s244
    %v246 = vld [vmem:[%s245] sm:$0x1]
    %s247 = sld [smem:[#allocation2 + $0x103]]
    %s248 = sadd.s32 %s247, 32
    %s249 = scalar_lea.vmem %s4, %s248
    %v250 = vld [vmem:[%s249] sm:$0x1]
    %s251 = sld [smem:[#allocation2 + $0x104]]
    %s252 = sadd.s32 %s251, 32
    %s253 = scalar_lea.vmem %s4, %s252
    %v254 = vld [vmem:[%s253] sm:$0x1]
    %s255 = sld [smem:[#allocation2 + $0x105]]
    %s256 = sadd.s32 %s255, 32
    %s257 = scalar_lea.vmem %s4, %s256
    %v258 = vld [vmem:[%s257] sm:$0x1]
    %s259 = sld [smem:[#allocation2 + $0x106]]
    %s260 = sadd.s32 %s259, 32
    %s261 = scalar_lea.vmem %s4, %s260
    %v262 = vld [vmem:[%s261] sm:$0x1]
    %s263 = sld [smem:[#allocation2 + $0x107]]
    %s264 = sadd.s32 %s263, 32
    %s265 = scalar_lea.vmem %s4, %s264
    %v266 = vld [vmem:[%s265] sm:$0x1]
    %v268 = vrot.slane %v242, 7
    %v271 = vrot.slane %v246, 6
    %v274 = vrot.slane %v250, 5
    %v277 = vrot.slane %v254, 4
    %v280 = vrot.slane %v258, 3
    %v283 = vrot.slane %v262, 2
    %v286 = vrot.slane %v266, 1
    %v288 = vsel %vm79, %v238, %v268
    %v289 = vsel %vm81, %v288, %v271
    %v290 = vsel %vm83, %v289, %v274
    %v291 = vsel %vm85, %v290, %v277
    %v292 = vsel %vm87, %v291, %v280
    %v293 = vsel %vm89, %v292, %v283
    %v294 = vsel %vm91, %v293, %v286
    %s295 = sld [smem:[#allocation2 + $0x180]]
    %s296 = sadd.s32 %s295, 48
    %s297 = scalar_lea.vmem %s4, %s296
    %v298 = vld [vmem:[%s297] sm:$0x1]
    %s299 = sld [smem:[#allocation2 + $0x181]]
    %s300 = sadd.s32 %s299, 48
    %s301 = scalar_lea.vmem %s4, %s300
    %v302 = vld [vmem:[%s301] sm:$0x1]
    %s303 = sld [smem:[#allocation2 + $0x182]]
    %s304 = sadd.s32 %s303, 48
    %s305 = scalar_lea.vmem %s4, %s304
    %v306 = vld [vmem:[%s305] sm:$0x1]
    %s307 = sld [smem:[#allocation2 + $0x183]]
    %s308 = sadd.s32 %s307, 48
    %s309 = scalar_lea.vmem %s4, %s308
    %v310 = vld [vmem:[%s309] sm:$0x1]
    %s311 = sld [smem:[#allocation2 + $0x184]]
    %s312 = sadd.s32 %s311, 48
    %s313 = scalar_lea.vmem %s4, %s312
    %v314 = vld [vmem:[%s313] sm:$0x1]
    %s315 = sld [smem:[#allocation2 + $0x185]]
    %s316 = sadd.s32 %s315, 48
    %s317 = scalar_lea.vmem %s4, %s316
    %v318 = vld [vmem:[%s317] sm:$0x1]
    %s319 = sld [smem:[#allocation2 + $0x186]]
    %s320 = sadd.s32 %s319, 48
    %s321 = scalar_lea.vmem %s4, %s320
    %v322 = vld [vmem:[%s321] sm:$0x1]
    %s323 = sld [smem:[#allocation2 + $0x187]]
    %s324 = sadd.s32 %s323, 48
    %s325 = scalar_lea.vmem %s4, %s324
    %v326 = vld [vmem:[%s325] sm:$0x1]
    %v328 = vrot.slane %v302, 7
    %v331 = vrot.slane %v306, 6
    %v334 = vrot.slane %v310, 5
    %v337 = vrot.slane %v314, 4
    %v340 = vrot.slane %v318, 3
    %v343 = vrot.slane %v322, 2
    %v346 = vrot.slane %v326, 1
    %v348 = vsel %vm79, %v298, %v328
    %v349 = vsel %vm81, %v348, %v331
    %v350 = vsel %vm83, %v349, %v334
    %v351 = vsel %vm85, %v350, %v337
    %v352 = vsel %vm87, %v351, %v340
    %v353 = vsel %vm89, %v352, %v343
    %v354 = vsel %vm91, %v353, %v346
    %356 = vrot.lane.b32.xlu0 %v110, 16
    %v357 = vpop.permute.xlu0 %356
    %360 = vrot.lane.b32.xlu0 %v126, 32
    %v361 = vpop.permute.xlu0 %360
    %364 = vrot.lane.b32.xlu0 %v142, 48
    %v365 = vpop.permute.xlu0 %364
    %368 = vrot.lane.b32.xlu0 %v158, 64
    %v369 = vpop.permute.xlu0 %368
    %372 = vrot.lane.b32.xlu0 %v218, 80
    %v373 = vpop.permute.xlu0 %372
    %376 = vrot.lane.b32.xlu0 %v234, 96
    %v377 = vpop.permute.xlu0 %376
    %380 = vrot.lane.b32.xlu0 %v294, 112
    %v381 = vpop.permute.xlu0 %380
    %vm383 = vcmask 130048
    %v384 = vsel %vm383, %v92, %v357
    %vm385 = vcmask 261120
    %v386 = vsel %vm385, %v384, %v361
    %vm387 = vcmask 392192
    %v388 = vsel %vm387, %v386, %v365
    %vm389 = vcmask 523264
    %v390 = vsel %vm389, %v388, %v369
    %vm391 = vcmask 654336
    %v392 = vsel %vm391, %v390, %v373
    %vm393 = vcmask 785408
    %v394 = vsel %vm393, %v392, %v377
    %vm395 = vcmask 916480
    %v396 = vsel %vm395, %v394, %v381
    %v397 = vsel %vm383, %v354, 0.0
    %398 = vst [vmem:[#allocation5] sm:$0xff] %v396
    %399 = vst [vmem:[#allocation5 + $0x8] sm:$0xff] %v397
    // Predicated region
    $region26: #{tpu_custom_call.1} parent=1 // pred_check
      _
    $region27: #{tpu_custom_call.1} parent=1 // pred_check_branch
      %401 = sbr.rel (0) target = $region29
    $region28: #{tpu_custom_call.1} parent=1 // pred_region
      %s403 = ssub.s32 256, 256
      %404 = vsyncadd [#allocation3], %s403
      %s406 = sshll.u32 [#allocation5], 4
      %s407 = int_to_ptr.vmem [resolvable:$true] %s406
      %409 = dma.vmem_to_hbm [thread:$0]  %s407, 256, %s5, [#allocation3]
    $region29: #{tpu_custom_call.1} parent=1 // pred_fallthru
      _
    // Predicated region
    $region30: #{tpu_custom_call.1} parent=1 // pred_check
      _
    $region31: #{tpu_custom_call.1} parent=1 // pred_check_branch
      %411 = sbr.rel (0) target = $region33
    $region32: #{tpu_custom_call.1} parent=1 // pred_region
      %412 = dma.done [#allocation3], 256
    $region33: #{tpu_custom_call.1} parent=1 // pred_fallthru
      _
    %413 = vsyncpa [#allocation3], 1
    %414 = vsyncpa [#allocation4], 1

</llo_original>
